<compile_context>
chip_gen: v5e
topology: v5e:2x2
jax: 0.10.0
libtpu: 0.0.40
codegen_flags: <defaults>
</compile_context>

<pallas_src>
import functools

import jax
import jax.numpy as jnp
import numpy as np
from jax.experimental import pallas as pl
from jax.experimental.pallas import tpu as pltpu


def encoder_cnn_kernel(x_ref,
                       wa_ref, ba_ref, wb_ref, bb_ref, wc_ref, bc_ref,
                       wd_ref, bd_ref, we_ref, be_ref,
                       o_ref, *, seq_len):
    """One grid step processes M = TB*seq_len flattened (batch, seq) rows."""
    M = x_ref.shape[0]
    x = x_ref[...]                                                # (M, E), f32

    # Boundary masks, hoisted: computed ONCE, reused by all 5 conv layers.
    row = jax.lax.broadcasted_iota(jnp.int32, (M, 1), 0)
    pos_in_seq = row % seq_len
    not_first = (pos_in_seq != 0).astype(jnp.float32)             # zero h[t-1] at t == 0
    not_last = (pos_in_seq != seq_len - 1).astype(jnp.float32)    # zero h[t+1] at t == S-1

    def conv3(h, w_ref, b_ref):
        # Conv1d(k=3, pad=1) as a single MXU matmul with K = 3*Cin.
        cin = h.shape[-1]
        zrow = jnp.zeros((1, cin), jnp.float32)
        prev = jnp.concatenate([zrow, h[:-1, :]], axis=0) * not_first   # h[t-1]
        nxt = jnp.concatenate([h[1:, :], zrow], axis=0) * not_last      # h[t+1]
        cat = jnp.concatenate([prev, h, nxt], axis=-1)                  # (M, 3*Cin)
        return (jnp.dot(cat, w_ref[...], preferred_element_type=jnp.float32)
                + b_ref[...])

    h = jnp.tanh(conv3(x, wa_ref, ba_ref))                        # (M, 2E)
    h = jnp.tanh(conv3(h, wb_ref, bb_ref) + h)
    h = jnp.tanh(conv3(h, wc_ref, bc_ref) + h)
    h = jnp.tanh(conv3(h, wd_ref, bd_ref) + h)
    h = jnp.tanh(conv3(h, we_ref, be_ref) + h)
    o_ref[...] = h.astype(o_ref.dtype)


def encoder_cnn_forward(tokens, lengths, params, *, rows_per_block=512):
    """Mirrors EncoderCNN.forward (eval mode). Returns (output, None, None)."""
    del lengths  # unused by the reference forward as well
    B, S = tokens.shape
    E = params["word_emb"].shape[1]
    C = 2 * E

    # Glue: embedding gathers + positional embedding, flattened to (B*S, E).
    word = jnp.take(params["word_emb"], tokens, axis=0)           # (B, S, E)
    pos = params["pos_emb"][:S]                                   # (S, E)
    embedded = (word + pos[None, :, :]).reshape(B * S, E)
    # TODO(synk): nn.Dropout(0.1) is implemented as eval-mode identity (no RNG mask).

    # Batch fusion: fold as many batch elements per grid step as fit the row
    # budget, so the MXU M-dimension is TB*S instead of S and per-step pipeline
    # overhead is amortized.  (For the small test shapes this is the whole batch.)
    tb = 1
    for cand in range(1, B + 1):
        if B % cand == 0 and cand * S <= max(S, rows_per_block):
            tb = cand
    mb = tb * S
    grid = (B // tb,)

    weight_args = []
    in_specs = [pl.BlockSpec((mb, E), lambda i: (i, 0))]
    for name in ["a", "b", "c", "d", "e"]:
        w = params[f"w{name}_flat"]                  # (3*Cin, Cout), k-major taps
        bias = params[f"b{name}"].reshape(1, C)      # (1, Cout)
        weight_args += [w, bias]
        in_specs += [pl.BlockSpec(w.shape, lambda i: (0, 0)),
                     pl.BlockSpec((1, C), lambda i: (0, 0))]

    out = pl.pallas_call(
        functools.partial(encoder_cnn_kernel, seq_len=S),
        out_shape=jax.ShapeDtypeStruct((B * S, C), jnp.float32),
        grid_spec=pltpu.PrefetchScalarGridSpec(
            num_scalar_prefetch=0,
            grid=grid,
            in_specs=in_specs,
            out_specs=pl.BlockSpec((mb, C), lambda i: (i, 0)),
        ),
        compiler_params=pltpu.CompilerParams(
            dimension_semantics=("parallel",),       # batch blocks shard across TCs (v7x)
            vmem_limit_bytes=64 * 1024 * 1024,
        ),
    )(embedded, *weight_args)
    return out.reshape(B, S, C), None, None


def init_params(key, num_embeddings, embedding_dim, seqlen):
    """Deterministic synthetic parameters matching the module's __init__ shapes."""
    E = embedding_dim
    C = 2 * E
    keys = jax.random.split(key, 2 + 2 * 5)

    word_emb = jax.random.normal(keys[0], (num_embeddings, E), jnp.float32)
    word_emb = word_emb.at[0].set(0.0)   # padding_idx = Language.PAD_IDX = 0
    pos_emb = jax.random.normal(keys[1], (seqlen, E), jnp.float32)
    pos_emb = pos_emb.at[0].set(0.0)     # padding_idx = 0 (as declared in the module)

    params = {"word_emb": word_emb, "pos_emb": pos_emb}
    cin = E
    for i, name in enumerate(["a", "b", "c", "d", "e"]):
        kw, kb = keys[2 + 2 * i], keys[3 + 2 * i]
        bound = 1.0 / np.sqrt(cin * 3)   # PyTorch Conv1d default init bound
        w_oik = jax.random.uniform(kw, (C, cin, 3), jnp.float32, -bound, bound)
        b = jax.random.uniform(kb, (C,), jnp.float32, -bound, bound)
        params[f"w{name}_oik"] = w_oik                                   # PyTorch (Cout, Cin, K)
        # Kernel layout: (K, Cin, Cout) flattened k-major -> (3*Cin, Cout), so
        # cat([h[t-1], h[t], h[t+1]]) @ w_flat reproduces the cross-correlation.
        params[f"w{name}_flat"] = jnp.transpose(w_oik, (2, 1, 0)).reshape(3 * cin, C)
        params[f"b{name}"] = b
        cin = C
    return params


def reference_forward(tokens, params):
    """Pure-JAX reference of EncoderCNN.forward (lax conv, NCL like PyTorch)."""
    B, S = tokens.shape
    word = jnp.take(params["word_emb"], tokens, axis=0)
    pos = jnp.take(params["pos_emb"],
                   jnp.broadcast_to(jnp.arange(S, dtype=jnp.int32), (B, S)), axis=0)
    x = jnp.transpose(word + pos, (0, 2, 1))                      # (B, E, S)

    def conv(x, w_oik, b):
        y = jax.lax.conv_general_dilated(
            x, w_oik, window_strides=(1,), padding=((1, 1),),
            dimension_numbers=("NCH", "OIH", "NCH"))
        return y + b[None, :, None]

    h = jnp.tanh(conv(x, params["wa_oik"], params["ba"]))
    for n in ["b", "c", "d", "e"]:
        h = jnp.tanh(conv(h, params[f"w{n}_oik"], params[f"b{n}"]) + h)
    return jnp.transpose(h, (0, 2, 1))                            # (B, S, 2E)


if __name__ == "__main__":
    # Small shapes implied by the module: batch=2, seq=8, embedding_dim=16, vocab=32.
    B, S, E, VOCAB = 2, 8, 16, 32
    key = jax.random.PRNGKey(0)
    k_tok, k_params = jax.random.split(key)

    tokens = jax.random.randint(k_tok, (B, S), 0, VOCAB, dtype=jnp.int32)
    lengths = jnp.full((B,), S, dtype=jnp.int32)
    params = init_params(k_params, VOCAB, E, seqlen=S)

    out, _, _ = encoder_cnn_forward(tokens, lengths, params)
    out = jax.block_until_ready(out)

    ref = jax.block_until_ready(reference_forward(tokens, params))
    assert out.shape == (B, S, 2 * E)
    np.testing.assert_allclose(np.asarray(out), np.asarray(ref), atol=2e-5, rtol=2e-5)

    print("KERNEL_OK")
</pallas_src>

<mosaic_0001>
module attributes {stable_mosaic.version = 11 : i64} {
  func.func @encoder_cnn_kernel(%arg0: i32, %arg1: memref<16x16xf32, #tpu.memory_space<vmem>>, %arg2: memref<48x32xf32, #tpu.memory_space<vmem>>, %arg3: memref<1x32xf32, #tpu.memory_space<vmem>>, %arg4: memref<96x32xf32, #tpu.memory_space<vmem>>, %arg5: memref<1x32xf32, #tpu.memory_space<vmem>>, %arg6: memref<96x32xf32, #tpu.memory_space<vmem>>, %arg7: memref<1x32xf32, #tpu.memory_space<vmem>>, %arg8: memref<96x32xf32, #tpu.memory_space<vmem>>, %arg9: memref<1x32xf32, #tpu.memory_space<vmem>>, %arg10: memref<96x32xf32, #tpu.memory_space<vmem>>, %arg11: memref<1x32xf32, #tpu.memory_space<vmem>>, %arg12: memref<16x32xf32, #tpu.memory_space<vmem>>) attributes {dimension_semantics = [#tpu.dimension_semantics<parallel>], iteration_bounds = array<i64: 1>, scalar_prefetch = 0 : i64, scratch_operands = 0 : i64, tpu.core_type = #tpu.core_type<tc>, window_params = [{transform_indices = @transform_0, window_bounds = array<i64: 16, 16>}, {pipeline_mode = #tpu.pipeline_mode<synchronous>, transform_indices = @transform_1, window_bounds = array<i64: 48, 32>}, {pipeline_mode = #tpu.pipeline_mode<synchronous>, transform_indices = @transform_2, window_bounds = array<i64: 1, 32>}, {pipeline_mode = #tpu.pipeline_mode<synchronous>, transform_indices = @transform_3, window_bounds = array<i64: 96, 32>}, {pipeline_mode = #tpu.pipeline_mode<synchronous>, transform_indices = @transform_4, window_bounds = array<i64: 1, 32>}, {pipeline_mode = #tpu.pipeline_mode<synchronous>, transform_indices = @transform_5, window_bounds = array<i64: 96, 32>}, {pipeline_mode = #tpu.pipeline_mode<synchronous>, transform_indices = @transform_6, window_bounds = array<i64: 1, 32>}, {pipeline_mode = #tpu.pipeline_mode<synchronous>, transform_indices = @transform_7, window_bounds = array<i64: 96, 32>}, {pipeline_mode = #tpu.pipeline_mode<synchronous>, transform_indices = @transform_8, window_bounds = array<i64: 1, 32>}, {pipeline_mode = #tpu.pipeline_mode<synchronous>, transform_indices = @transform_9, window_bounds = array<i64: 96, 32>}, {pipeline_mode = #tpu.pipeline_mode<synchronous>, transform_indices = @transform_10, window_bounds = array<i64: 1, 32>}, {transform_indices = @transform_11, window_bounds = array<i64: 16, 32>}]} {
    %c0 = arith.constant 0 : index
    %c0_0 = arith.constant 0 : index
    %0 = vector.load %arg1[%c0, %c0_0] : memref<16x16xf32, #tpu.memory_space<vmem>>, vector<16x16xf32>
    %1 = tpu.iota {dimensions = array<i32: 0>} : vector<16x1xi32>
    %c8_i32 = arith.constant 8 : i32
    %c0_i32 = arith.constant 0 : i32
    %2 = arith.cmpi eq, %c8_i32, %c0_i32 : i32
    %c1_i32 = arith.constant 1 : i32
    %3 = arith.select %2, %c1_i32, %c8_i32 : i32
    %4 = vector.broadcast %3 : i32 to vector<16x1xi32>
    %5 = arith.remsi %1, %4 : vector<16x1xi32>
    %c0_i32_1 = arith.constant 0 : i32
    %6 = vector.broadcast %c0_i32_1 : i32 to vector<16x1xi32>
    %7 = arith.cmpi ne, %5, %6 : vector<16x1xi32>
    %c0_i32_2 = arith.constant 0 : i32
    %8 = vector.broadcast %c0_i32_2 : i32 to vector<16x1xi32>
    %9 = arith.cmpi slt, %5, %8 : vector<16x1xi32>
    %c0_i32_3 = arith.constant 0 : i32
    %10 = arith.cmpi slt, %3, %c0_i32_3 : i32
    %11 = vector.broadcast %10 : i1 to vector<16x1xi1>
    %12 = vector.broadcast %11 : vector<16x1xi1> to vector<16x1xi1>
    %13 = arith.xori %9, %12 : vector<16x1xi1>
    %14 = arith.andi %13, %7 : vector<16x1xi1>
    %15 = vector.broadcast %3 : i32 to vector<16x1xi32>
    %16 = arith.addi %5, %15 : vector<16x1xi32>
    %17 = arith.select %14, %16, %5 : vector<16x1xi1>, vector<16x1xi32>
    %c0_i32_4 = arith.constant 0 : i32
    %18 = vector.broadcast %c0_i32_4 : i32 to vector<16x1xi32>
    %19 = arith.cmpi ne, %17, %18 : vector<16x1xi32>
    %20 = arith.extui %19 : vector<16x1xi1> to vector<16x1xi32>
    %21 = arith.sitofp %20 : vector<16x1xi32> to vector<16x1xf32>
    %c7_i32 = arith.constant 7 : i32
    %22 = vector.broadcast %c7_i32 : i32 to vector<16x1xi32>
    %23 = arith.cmpi ne, %17, %22 : vector<16x1xi32>
    %24 = arith.extui %23 : vector<16x1xi1> to vector<16x1xi32>
    %25 = arith.sitofp %24 : vector<16x1xi32> to vector<16x1xf32>
    %cst = arith.constant 0.000000e+00 : f32
    %26 = vector.broadcast %cst : f32 to vector<1x16xf32>
    %27 = vector.extract_strided_slice %0 {offsets = [0, 0], sizes = [15, 16], strides = [1, 1]} : vector<16x16xf32> to vector<15x16xf32>
    %28 = tpu.concatenate %26, %27 in 0 : vector<1x16xf32>, vector<15x16xf32> -> vector<16x16xf32>
    %29 = vector.broadcast %21 : vector<16x1xf32> to vector<16x16xf32>
    %30 = arith.mulf %28, %29 : vector<16x16xf32>
    %31 = vector.extract_strided_slice %0 {offsets = [1, 0], sizes = [15, 16], strides = [1, 1]} : vector<16x16xf32> to vector<15x16xf32>
    %32 = tpu.concatenate %31, %26 in 0 : vector<15x16xf32>, vector<1x16xf32> -> vector<16x16xf32>
    %33 = vector.broadcast %25 : vector<16x1xf32> to vector<16x16xf32>
    %34 = arith.mulf %32, %33 : vector<16x16xf32>
    %35 = tpu.concatenate %30, %0, %34 in 1 : vector<16x16xf32>, vector<16x16xf32>, vector<16x16xf32> -> vector<16x48xf32>
    %c0_5 = arith.constant 0 : index
    %c0_6 = arith.constant 0 : index
    %36 = vector.load %arg2[%c0_5, %c0_6] : memref<48x32xf32, #tpu.memory_space<vmem>>, vector<48x32xf32>
    %cst_7 = arith.constant dense<0.000000e+00> : vector<16x32xf32>
    %37 = tpu.matmul %35, %36, %cst_7 {dimension_numbers = #tpu.dot_dimension_numbers<[1], [0], [0], [1], [0, 0, 1, 1], [], []>} : vector<16x48xf32>, vector<48x32xf32>, vector<16x32xf32> -> vector<16x32xf32>
    %c0_8 = arith.constant 0 : index
    %c0_9 = arith.constant 0 : index
    %38 = vector.load %arg3[%c0_8, %c0_9] : memref<1x32xf32, #tpu.memory_space<vmem>>, vector<1x32xf32>
    %39 = vector.broadcast %38 : vector<1x32xf32> to vector<16x32xf32>
    %40 = arith.addf %37, %39 : vector<16x32xf32>
    %41 = math.tanh %40 : vector<16x32xf32>
    %cst_10 = arith.constant 0.000000e+00 : f32
    %42 = vector.broadcast %cst_10 : f32 to vector<1x32xf32>
    %43 = vector.extract_strided_slice %41 {offsets = [0, 0], sizes = [15, 32], strides = [1, 1]} : vector<16x32xf32> to vector<15x32xf32>
    %44 = tpu.concatenate %42, %43 in 0 : vector<1x32xf32>, vector<15x32xf32> -> vector<16x32xf32>
    %45 = vector.broadcast %21 : vector<16x1xf32> to vector<16x32xf32>
    %46 = arith.mulf %44, %45 : vector<16x32xf32>
    %47 = vector.extract_strided_slice %41 {offsets = [1, 0], sizes = [15, 32], strides = [1, 1]} : vector<16x32xf32> to vector<15x32xf32>
    %48 = tpu.concatenate %47, %42 in 0 : vector<15x32xf32>, vector<1x32xf32> -> vector<16x32xf32>
    %49 = vector.broadcast %25 : vector<16x1xf32> to vector<16x32xf32>
    %50 = arith.mulf %48, %49 : vector<16x32xf32>
    %51 = tpu.concatenate %46, %41, %50 in 1 : vector<16x32xf32>, vector<16x32xf32>, vector<16x32xf32> -> vector<16x96xf32>
    %c0_11 = arith.constant 0 : index
    %c0_12 = arith.constant 0 : index
    %52 = vector.load %arg4[%c0_11, %c0_12] : memref<96x32xf32, #tpu.memory_space<vmem>>, vector<96x32xf32>
    %cst_13 = arith.constant dense<0.000000e+00> : vector<16x32xf32>
    %53 = tpu.matmul %51, %52, %cst_13 {dimension_numbers = #tpu.dot_dimension_numbers<[1], [0], [0], [1], [0, 0, 1, 1], [], []>} : vector<16x96xf32>, vector<96x32xf32>, vector<16x32xf32> -> vector<16x32xf32>
    %c0_14 = arith.constant 0 : index
    %c0_15 = arith.constant 0 : index
    %54 = vector.load %arg5[%c0_14, %c0_15] : memref<1x32xf32, #tpu.memory_space<vmem>>, vector<1x32xf32>
    %55 = vector.broadcast %54 : vector<1x32xf32> to vector<16x32xf32>
    %56 = arith.addf %53, %55 : vector<16x32xf32>
    %57 = arith.addf %56, %41 : vector<16x32xf32>
    %58 = math.tanh %57 : vector<16x32xf32>
    %cst_16 = arith.constant 0.000000e+00 : f32
    %59 = vector.broadcast %cst_16 : f32 to vector<1x32xf32>
    %60 = vector.extract_strided_slice %58 {offsets = [0, 0], sizes = [15, 32], strides = [1, 1]} : vector<16x32xf32> to vector<15x32xf32>
    %61 = tpu.concatenate %59, %60 in 0 : vector<1x32xf32>, vector<15x32xf32> -> vector<16x32xf32>
    %62 = vector.broadcast %21 : vector<16x1xf32> to vector<16x32xf32>
    %63 = arith.mulf %61, %62 : vector<16x32xf32>
    %64 = vector.extract_strided_slice %58 {offsets = [1, 0], sizes = [15, 32], strides = [1, 1]} : vector<16x32xf32> to vector<15x32xf32>
    %65 = tpu.concatenate %64, %59 in 0 : vector<15x32xf32>, vector<1x32xf32> -> vector<16x32xf32>
    %66 = vector.broadcast %25 : vector<16x1xf32> to vector<16x32xf32>
    %67 = arith.mulf %65, %66 : vector<16x32xf32>
    %68 = tpu.concatenate %63, %58, %67 in 1 : vector<16x32xf32>, vector<16x32xf32>, vector<16x32xf32> -> vector<16x96xf32>
    %c0_17 = arith.constant 0 : index
    %c0_18 = arith.constant 0 : index
    %69 = vector.load %arg6[%c0_17, %c0_18] : memref<96x32xf32, #tpu.memory_space<vmem>>, vector<96x32xf32>
    %cst_19 = arith.constant dense<0.000000e+00> : vector<16x32xf32>
    %70 = tpu.matmul %68, %69, %cst_19 {dimension_numbers = #tpu.dot_dimension_numbers<[1], [0], [0], [1], [0, 0, 1, 1], [], []>} : vector<16x96xf32>, vector<96x32xf32>, vector<16x32xf32> -> vector<16x32xf32>
    %c0_20 = arith.constant 0 : index
    %c0_21 = arith.constant 0 : index
    %71 = vector.load %arg7[%c0_20, %c0_21] : memref<1x32xf32, #tpu.memory_space<vmem>>, vector<1x32xf32>
    %72 = vector.broadcast %71 : vector<1x32xf32> to vector<16x32xf32>
    %73 = arith.addf %70, %72 : vector<16x32xf32>
    %74 = arith.addf %73, %58 : vector<16x32xf32>
    %75 = math.tanh %74 : vector<16x32xf32>
    %cst_22 = arith.constant 0.000000e+00 : f32
    %76 = vector.broadcast %cst_22 : f32 to vector<1x32xf32>
    %77 = vector.extract_strided_slice %75 {offsets = [0, 0], sizes = [15, 32], strides = [1, 1]} : vector<16x32xf32> to vector<15x32xf32>
    %78 = tpu.concatenate %76, %77 in 0 : vector<1x32xf32>, vector<15x32xf32> -> vector<16x32xf32>
    %79 = vector.broadcast %21 : vector<16x1xf32> to vector<16x32xf32>
    %80 = arith.mulf %78, %79 : vector<16x32xf32>
    %81 = vector.extract_strided_slice %75 {offsets = [1, 0], sizes = [15, 32], strides = [1, 1]} : vector<16x32xf32> to vector<15x32xf32>
    %82 = tpu.concatenate %81, %76 in 0 : vector<15x32xf32>, vector<1x32xf32> -> vector<16x32xf32>
    %83 = vector.broadcast %25 : vector<16x1xf32> to vector<16x32xf32>
    %84 = arith.mulf %82, %83 : vector<16x32xf32>
    %85 = tpu.concatenate %80, %75, %84 in 1 : vector<16x32xf32>, vector<16x32xf32>, vector<16x32xf32> -> vector<16x96xf32>
    %c0_23 = arith.constant 0 : index
    %c0_24 = arith.constant 0 : index
    %86 = vector.load %arg8[%c0_23, %c0_24] : memref<96x32xf32, #tpu.memory_space<vmem>>, vector<96x32xf32>
    %cst_25 = arith.constant dense<0.000000e+00> : vector<16x32xf32>
    %87 = tpu.matmul %85, %86, %cst_25 {dimension_numbers = #tpu.dot_dimension_numbers<[1], [0], [0], [1], [0, 0, 1, 1], [], []>} : vector<16x96xf32>, vector<96x32xf32>, vector<16x32xf32> -> vector<16x32xf32>
    %c0_26 = arith.constant 0 : index
    %c0_27 = arith.constant 0 : index
    %88 = vector.load %arg9[%c0_26, %c0_27] : memref<1x32xf32, #tpu.memory_space<vmem>>, vector<1x32xf32>
    %89 = vector.broadcast %88 : vector<1x32xf32> to vector<16x32xf32>
    %90 = arith.addf %87, %89 : vector<16x32xf32>
    %91 = arith.addf %90, %75 : vector<16x32xf32>
    %92 = math.tanh %91 : vector<16x32xf32>
    %cst_28 = arith.constant 0.000000e+00 : f32
    %93 = vector.broadcast %cst_28 : f32 to vector<1x32xf32>
    %94 = vector.extract_strided_slice %92 {offsets = [0, 0], sizes = [15, 32], strides = [1, 1]} : vector<16x32xf32> to vector<15x32xf32>
    %95 = tpu.concatenate %93, %94 in 0 : vector<1x32xf32>, vector<15x32xf32> -> vector<16x32xf32>
    %96 = vector.broadcast %21 : vector<16x1xf32> to vector<16x32xf32>
    %97 = arith.mulf %95, %96 : vector<16x32xf32>
    %98 = vector.extract_strided_slice %92 {offsets = [1, 0], sizes = [15, 32], strides = [1, 1]} : vector<16x32xf32> to vector<15x32xf32>
    %99 = tpu.concatenate %98, %93 in 0 : vector<15x32xf32>, vector<1x32xf32> -> vector<16x32xf32>
    %100 = vector.broadcast %25 : vector<16x1xf32> to vector<16x32xf32>
    %101 = arith.mulf %99, %100 : vector<16x32xf32>
    %102 = tpu.concatenate %97, %92, %101 in 1 : vector<16x32xf32>, vector<16x32xf32>, vector<16x32xf32> -> vector<16x96xf32>
    %c0_29 = arith.constant 0 : index
    %c0_30 = arith.constant 0 : index
    %103 = vector.load %arg10[%c0_29, %c0_30] : memref<96x32xf32, #tpu.memory_space<vmem>>, vector<96x32xf32>
    %cst_31 = arith.constant dense<0.000000e+00> : vector<16x32xf32>
    %104 = tpu.matmul %102, %103, %cst_31 {dimension_numbers = #tpu.dot_dimension_numbers<[1], [0], [0], [1], [0, 0, 1, 1], [], []>} : vector<16x96xf32>, vector<96x32xf32>, vector<16x32xf32> -> vector<16x32xf32>
    %c0_32 = arith.constant 0 : index
    %c0_33 = arith.constant 0 : index
    %105 = vector.load %arg11[%c0_32, %c0_33] : memref<1x32xf32, #tpu.memory_space<vmem>>, vector<1x32xf32>
    %106 = vector.broadcast %105 : vector<1x32xf32> to vector<16x32xf32>
    %107 = arith.addf %104, %106 : vector<16x32xf32>
    %108 = arith.addf %107, %92 : vector<16x32xf32>
    %109 = math.tanh %108 : vector<16x32xf32>
    %c0_34 = arith.constant 0 : index
    %c0_35 = arith.constant 0 : index
    %110 = vector.load %arg12[%c0_34, %c0_35] : memref<16x32xf32, #tpu.memory_space<vmem>>, vector<16x32xf32>
    tpu.vector_store %arg12[%c0_34, %c0_35], %109 {strides = array<i32>} : memref<16x32xf32, #tpu.memory_space<vmem>>, vector<16x32xf32>,
    return
  }
  func.func @transform_0(%arg0: i32) -> (i32, i32) {
    %c0_i32 = arith.constant 0 : i32
    %c0_i32_0 = arith.constant 0 : i32
    return %arg0, %c0_i32 : i32, i32
  }
  func.func @transform_1(%arg0: i32) -> (i32, i32) {
    %c0_i32 = arith.constant 0 : i32
    %c0_i32_0 = arith.constant 0 : i32
    %c0_i32_1 = arith.constant 0 : i32
    return %c0_i32, %c0_i32_0 : i32, i32
  }
  func.func @transform_2(%arg0: i32) -> (i32, i32) {
    %c0_i32 = arith.constant 0 : i32
    %c0_i32_0 = arith.constant 0 : i32
    %c0_i32_1 = arith.constant 0 : i32
    return %c0_i32, %c0_i32_0 : i32, i32
  }
  func.func @transform_3(%arg0: i32) -> (i32, i32) {
    %c0_i32 = arith.constant 0 : i32
    %c0_i32_0 = arith.constant 0 : i32
    %c0_i32_1 = arith.constant 0 : i32
    return %c0_i32, %c0_i32_0 : i32, i32
  }
  func.func @transform_4(%arg0: i32) -> (i32, i32) {
    %c0_i32 = arith.constant 0 : i32
    %c0_i32_0 = arith.constant 0 : i32
    %c0_i32_1 = arith.constant 0 : i32
    return %c0_i32, %c0_i32_0 : i32, i32
  }
  func.func @transform_5(%arg0: i32) -> (i32, i32) {
    %c0_i32 = arith.constant 0 : i32
    %c0_i32_0 = arith.constant 0 : i32
    %c0_i32_1 = arith.constant 0 : i32
    return %c0_i32, %c0_i32_0 : i32, i32
  }
  func.func @transform_6(%arg0: i32) -> (i32, i32) {
    %c0_i32 = arith.constant 0 : i32
    %c0_i32_0 = arith.constant 0 : i32
    %c0_i32_1 = arith.constant 0 : i32
    return %c0_i32, %c0_i32_0 : i32, i32
  }
  func.func @transform_7(%arg0: i32) -> (i32, i32) {
    %c0_i32 = arith.constant 0 : i32
    %c0_i32_0 = arith.constant 0 : i32
    %c0_i32_1 = arith.constant 0 : i32
    return %c0_i32, %c0_i32_0 : i32, i32
  }
  func.func @transform_8(%arg0: i32) -> (i32, i32) {
    %c0_i32 = arith.constant 0 : i32
    %c0_i32_0 = arith.constant 0 : i32
    %c0_i32_1 = arith.constant 0 : i32
    return %c0_i32, %c0_i32_0 : i32, i32
  }
  func.func @transform_9(%arg0: i32) -> (i32, i32) {
    %c0_i32 = arith.constant 0 : i32
    %c0_i32_0 = arith.constant 0 : i32
    %c0_i32_1 = arith.constant 0 : i32
    return %c0_i32, %c0_i32_0 : i32, i32
  }
  func.func @transform_10(%arg0: i32) -> (i32, i32) {
    %c0_i32 = arith.constant 0 : i32
    %c0_i32_0 = arith.constant 0 : i32
    %c0_i32_1 = arith.constant 0 : i32
    return %c0_i32, %c0_i32_0 : i32, i32
  }
  func.func @transform_11(%arg0: i32) -> (i32, i32) {
    %c0_i32 = arith.constant 0 : i32
    %c0_i32_0 = arith.constant 0 : i32
    return %arg0, %c0_i32 : i32, i32
  }
}

</mosaic_0001>

<llo_original>
// kernel: tpu_custom_call.1
$region0: #{tpu_custom_call.1}
  #allocation0 [shape = 'u32[]', space=smem, size = 0x4, offset = 0x4, fixed_abs, tag = 'smem constant byte address 0x4 - core index']
  #allocation1 [shape = 'u32[72,128]{1,0:T(1,128)}', space=vmem, size = 0x9000, scoped, tag = 'internal scratch']
  %s0 = inlined_call_operand.vmem [shape: f32[16,16], index: 0, kind: input, shape index: {}]
  %s1 = inlined_call_operand.vmem [shape: f32[48,32], index: 1, kind: input, shape index: {}]
  %s2 = inlined_call_operand.vmem [shape: f32[1,32], index: 2, kind: input, shape index: {}]
  %s3 = inlined_call_operand.vmem [shape: f32[96,32], index: 3, kind: input, shape index: {}]
  %s4 = inlined_call_operand.vmem [shape: f32[1,32], index: 4, kind: input, shape index: {}]
  %s5 = inlined_call_operand.vmem [shape: f32[96,32], index: 5, kind: input, shape index: {}]
  %s6 = inlined_call_operand.vmem [shape: f32[1,32], index: 6, kind: input, shape index: {}]
  %s7 = inlined_call_operand.vmem [shape: f32[96,32], index: 7, kind: input, shape index: {}]
  %s8 = inlined_call_operand.vmem [shape: f32[1,32], index: 8, kind: input, shape index: {}]
  %s9 = inlined_call_operand.vmem [shape: f32[96,32], index: 9, kind: input, shape index: {}]
  %s10 = inlined_call_operand.vmem [shape: f32[1,32], index: 10, kind: input, shape index: {}]
  %s11 = inlined_call_operand.hbm [shape: f32[16,32], index: 11, kind: output, shape index: {}]
  %s12 = sld [smem:[#allocation0]]
  $region54: #{tpu_custom_call.1} parent=0
    _
  %s14 = ssub.s32 1, %s12
  %s15 = scalar_select 0, %s14, %s12
  $region1: #{tpu_custom_call.1} parent=0
    #allocation2 [shape = 'u8[8192]{0}', space=vmem, size = 0x2000, scoped, tag = 'output window, operand 0, single buffered']
    #allocation3 [shape = 's32[1]{0}', space=sflag, size = 0x4, scoped, tag = 'scoped memory for tpu_custom_call.1']
    %16 = vsyncpa [#allocation3], 0
    // Predicated region
    $region2: #{tpu_custom_call.1} parent=1 // pred_check
      _
    $region3: #{tpu_custom_call.1} parent=1 // pred_check_branch
      %18 = sbr.rel (0) target = $region5
    $region4: #{tpu_custom_call.1} parent=1 // pred_region
      _
    $region5: #{tpu_custom_call.1} parent=1 // pred_fallthru
      _
    // Predicated region
    $region6: #{tpu_custom_call.1} parent=1 // pred_check
      _
    $region7: #{tpu_custom_call.1} parent=1 // pred_check_branch
      %20 = sbr.rel (0) target = $region9
    $region8: #{tpu_custom_call.1} parent=1 // pred_region
      _
    $region9: #{tpu_custom_call.1} parent=1 // pred_fallthru
      _
    // Predicated region
    $region10: #{tpu_custom_call.1} parent=1 // pred_check
      _
    $region11: #{tpu_custom_call.1} parent=1 // pred_check_branch
      %22 = sbr.rel (0) target = $region13
    $region12: #{tpu_custom_call.1} parent=1 // pred_region
      _
    $region13: #{tpu_custom_call.1} parent=1 // pred_fallthru
      _
    // Predicated region
    $region14: #{tpu_custom_call.1} parent=1 // pred_check
      _
    $region15: #{tpu_custom_call.1} parent=1 // pred_check_branch
      %24 = sbr.rel (0) target = $region17
    $region16: #{tpu_custom_call.1} parent=1 // pred_region
      _
    $region17: #{tpu_custom_call.1} parent=1 // pred_fallthru
      _
    // Predicated region
    $region18: #{tpu_custom_call.1} parent=1 // pred_check
      _
    $region19: #{tpu_custom_call.1} parent=1 // pred_check_branch
      %26 = sbr.rel (0) target = $region21
    $region20: #{tpu_custom_call.1} parent=1 // pred_region
      _
    $region21: #{tpu_custom_call.1} parent=1 // pred_fallthru
      _
    // Predicated region
    $region22: #{tpu_custom_call.1} parent=1 // pred_check
      _
    $region23: #{tpu_custom_call.1} parent=1 // pred_check_branch
      %28 = sbr.rel (0) target = $region25
    $region24: #{tpu_custom_call.1} parent=1 // pred_region
      _
    $region25: #{tpu_custom_call.1} parent=1 // pred_fallthru
      _
    // Predicated region
    $region26: #{tpu_custom_call.1} parent=1 // pred_check
      _
    $region27: #{tpu_custom_call.1} parent=1 // pred_check_branch
      %30 = sbr.rel (0) target = $region29
    $region28: #{tpu_custom_call.1} parent=1 // pred_region
      _
    $region29: #{tpu_custom_call.1} parent=1 // pred_fallthru
      _
    // Predicated region
    $region30: #{tpu_custom_call.1} parent=1 // pred_check
      _
    $region31: #{tpu_custom_call.1} parent=1 // pred_check_branch
      %32 = sbr.rel (0) target = $region33
    $region32: #{tpu_custom_call.1} parent=1 // pred_region
      _
    $region33: #{tpu_custom_call.1} parent=1 // pred_fallthru
      _
    // Predicated region
    $region34: #{tpu_custom_call.1} parent=1 // pred_check
      _
    $region35: #{tpu_custom_call.1} parent=1 // pred_check_branch
      %34 = sbr.rel (0) target = $region37
    $region36: #{tpu_custom_call.1} parent=1 // pred_region
      _
    $region37: #{tpu_custom_call.1} parent=1 // pred_fallthru
      _
    // Predicated region
    $region38: #{tpu_custom_call.1} parent=1 // pred_check
      _
    $region39: #{tpu_custom_call.1} parent=1 // pred_check_branch
      %36 = sbr.rel (0) target = $region41
    $region40: #{tpu_custom_call.1} parent=1 // pred_region
      _
    $region41: #{tpu_custom_call.1} parent=1 // pred_fallthru
      _
    // Predicated region
    $region42: #{tpu_custom_call.1} parent=1 // pred_check
      _
    $region43: #{tpu_custom_call.1} parent=1 // pred_check_branch
      %38 = sbr.rel (0) target = $region45
    $region44: #{tpu_custom_call.1} parent=1 // pred_region
      _
    $region45: #{tpu_custom_call.1} parent=1 // pred_fallthru
      _
    %v39 = vld [vmem:[%s0] sm:$0xff]
    %v40 = vld [vmem:[%s0 + $0x8] sm:$0xff]
    %v41 = vlaneseq
    %v42 = vshrl.u32 %v41, 7
    %v43 = vadd.s32 %v42, 8
    %vm44 = vcmp.lt.s32.totalorder %v42, 0
    %v45 = vsub.s32 0, %v42
    %v46 = vsel %vm44, %v45, %v42
    %v47 = vshrl.u32 %v46, 3
    %v48 = vand.u32 %v46, 7
    %v49 = vsub.s32 0, %v48
    %v50 = vsel %vm44, %v49, %v48
    %vm51 = vcmp.lt.s32.totalorder %v43, 0
    %v52 = vsub.s32 0, %v43
    %v53 = vsel %vm51, %v52, %v43
    %v54 = vshrl.u32 %v53, 3
    %v55 = vand.u32 %v53, 7
    %v56 = vsub.s32 0, %v55
    %v57 = vsel %vm51, %v56, %v55
    %vm58 = vcmp.ne.s32.totalorder %v50, 0
    %vm59 = vcmp.ne.s32.totalorder %v57, 0
    %vm60 = vcmp.lt.s32.totalorder %v50, 0
    %vm61 = vcmp.lt.s32.totalorder %v57, 0
    %vm62 = vmand %vm60, %vm58
    %vm63 = vmand %vm61, %vm59
    %v64 = vadd.s32 %v50, 8
    %v65 = vadd.s32 %v57, 8
    %v66 = vsel %vm62, %v64, %v50
    %v67 = vsel %vm63, %v65, %v57
    %vm68 = vcmp.ne.s32.totalorder %v66, 0
    %vm69 = vcmp.ne.s32.totalorder %v67, 0
    %v70 = vsel %vm68, 1, 0
    %v71 = vsel %vm69, 1, 0
    %v72 = vcvt.s32.f32 %v70
    %v73 = vcvt.s32.f32 %v71
    %vm74 = vcmp.ne.s32.totalorder %v66, 7
    %vm75 = vcmp.ne.s32.totalorder %v67, 7
    %v76 = vsel %vm74, 1, 0
    %v77 = vsel %vm75, 1, 0
    %v78 = vcvt.s32.f32 %v76
    %v79 = vcvt.s32.f32 %v77
    %vm82 = vcmask 1040384
    %v83 = vrot.slane %v39, 7
    %v84 = vrot.slane %v40, 7
    %v85 = vsel %vm82, %v83, %v84
    %v88 = vsel %vm82, 0.0, %v83
    %v89 = vmul.f32 %v88, %v72
    %v90 = vmul.f32 %v85, %v73
    %vm91 = vcmask 1046528
    %v92 = vrot.slane %v39, 1
    %v93 = vrot.slane %v40, 1
    %v94 = vsel %vm91, %v92, %v93
    %v97 = vsel %vm91, %v93, 0.0
    %v98 = vmul.f32 %v94, %v78
    %v99 = vmul.f32 %v97, %v79
    %100 = vrot.lane.b32.xlu0 %v39, 16
    %v101 = vpop.permute.xlu0 %100
    %102 = vrot.lane.b32.xlu0 %v40, 16
    %v103 = vpop.permute.xlu0 %102
    %108 = vrot.lane.b32.xlu0 %v98, 32
    %v109 = vpop.permute.xlu0 %108
    %110 = vrot.lane.b32.xlu0 %v99, 32
    %v111 = vpop.permute.xlu0 %110
    %vm114 = vcmask 130048
    %v115 = vsel %vm114, %v89, %v101
    %v116 = vsel %vm114, %v90, %v103
    %vm117 = vcmask 261120
    %v118 = vsel %vm117, %v115, %v109
    %v119 = vsel %vm117, %v116, %v111
    %v120 = vld [vmem:[%s1] sm:$0xff]
    %v121 = vld [vmem:[%s1 + $0x8] sm:$0xff]
    %v122 = vld [vmem:[%s1 + $0x10] sm:$0xff]
    %v123 = vld [vmem:[%s1 + $0x18] sm:$0xff]
    %v124 = vld [vmem:[%s1 + $0x20] sm:$0xff]
    %v125 = vld [vmem:[%s1 + $0x28] sm:$0xff]
    %v126 = vld [vmem:[%s2] sm:$0x1]
    %v128 = vperm.slane %v126, 0
    %vm130 = vcmask 392192
    %v132 = vsel %vm130, %v118, 0
    %v135 = vsel %vm130, %v119, 0
    %137 = vmatpush.msra.mxu0 0.0
    %138 = vmatpush.msra.mxu0 0.0
    %139 = vmatpush.msra.mxu0 0.0
    %140 = vmatpush.msra.mxu0 0.0
    %141 = vmatpush.msra.mxu0 0.0
    %142 = vmatpush.msra.mxu0 0.0
    %143 = vmatpush.msra.mxu0 0.0
    %144 = vmatpush.msra.mxu0 0.0
    %145 = vmatpush.msra.mxu0 0.0
    %146 = vmatpush.msra.mxu0 0.0
    %147 = vmatpush.msra.mxu0 %v125
    %148 = vmatpush.msra.mxu0 %v124
    %149 = vmatpush.msra.mxu0 %v123
    %150 = vmatpush.msra.mxu0 %v122
    %151 = vmatpush.msra.mxu0 %v121
    %152 = vmatpush.msra.mxu0 %v120
    %153 = vmatmul.f32.gmra.mxu0 %v132
    %v154 = vpop.f32.mrf.mxu0
    %v155 = vadd.f32 %v128, %v154
    %156 = vmatmul.f32.gmra.mxu0 %v135
    %v157 = vpop.f32.mrf.mxu0
    %v158 = vadd.f32 %v128, %v157
    %159 = vdwg.mxu0
    %v160 = vtanh.pop %v155
    %v161 = vtanh.pop %v158
    %v164 = vrot.slane %v160, 7
    %v165 = vrot.slane %v161, 7
    %v166 = vsel %vm82, %v164, %v165
    %v169 = vsel %vm82, 0.0, %v164
    %v170 = vmul.f32 %v169, %v72
    %v171 = vmul.f32 %v166, %v73
    %v172 = vrot.slane %v160, 1
    %v173 = vrot.slane %v161, 1
    %v174 = vsel %vm91, %v172, %v173
    %v177 = vsel %vm91, %v173, 0.0
    %v178 = vmul.f32 %v174, %v78
    %v179 = vmul.f32 %v177, %v79
    %180 = vrot.lane.b32.xlu0 %v160, 32
    %v181 = vpop.permute.xlu0 %180
    %182 = vrot.lane.b32.xlu0 %v161, 32
    %v183 = vpop.permute.xlu0 %182
    %188 = vrot.lane.b32.xlu0 %v178, 64
    %v189 = vpop.permute.xlu0 %188
    %190 = vrot.lane.b32.xlu0 %v179, 64
    %v191 = vpop.permute.xlu0 %190
    %v194 = vsel %vm117, %v170, %v181
    %v195 = vsel %vm117, %v171, %v183
    %vm196 = vcmask 523264
    %v197 = vsel %vm196, %v194, %v189
    %v198 = vsel %vm196, %v195, %v191
    %v199 = vld [vmem:[%s3] sm:$0xff]
    %v200 = vld [vmem:[%s3 + $0x8] sm:$0xff]
    %v201 = vld [vmem:[%s3 + $0x10] sm:$0xff]
    %v202 = vld [vmem:[%s3 + $0x18] sm:$0xff]
    %v203 = vld [vmem:[%s3 + $0x20] sm:$0xff]
    %v204 = vld [vmem:[%s3 + $0x28] sm:$0xff]
    %v205 = vld [vmem:[%s3 + $0x30] sm:$0xff]
    %v206 = vld [vmem:[%s3 + $0x38] sm:$0xff]
    %v207 = vld [vmem:[%s3 + $0x40] sm:$0xff]
    %v208 = vld [vmem:[%s3 + $0x48] sm:$0xff]
    %v209 = vld [vmem:[%s3 + $0x50] sm:$0xff]
    %v210 = vld [vmem:[%s3 + $0x58] sm:$0xff]
    %v211 = vld [vmem:[%s4] sm:$0x1]
    %v213 = vperm.slane %v211, 0
    %vm215 = vcmask 785408
    %v217 = vsel %vm215, %v197, 0
    %v220 = vsel %vm215, %v198, 0
    %222 = vmatpush.msra.mxu0 0.0
    %223 = vmatpush.msra.mxu0 0.0
    %224 = vmatpush.msra.mxu0 0.0
    %225 = vmatpush.msra.mxu0 0.0
    %226 = vmatpush.msra.mxu0 %v210
    %227 = vmatpush.msra.mxu0 %v209
    %228 = vmatpush.msra.mxu0 %v208
    %229 = vmatpush.msra.mxu0 %v207
    %230 = vmatpush.msra.mxu0 %v206
    %231 = vmatpush.msra.mxu0 %v205
    %232 = vmatpush.msra.mxu0 %v204
    %233 = vmatpush.msra.mxu0 %v203
    %234 = vmatpush.msra.mxu0 %v202
    %235 = vmatpush.msra.mxu0 %v201
    %236 = vmatpush.msra.mxu0 %v200
    %237 = vmatpush.msra.mxu0 %v199
    %238 = vmatmul.f32.gmra.mxu0 %v217
    %v239 = vpop.f32.mrf.mxu0
    %v240 = vadd.f32 %v213, %v239
    %241 = vmatmul.f32.gmra.mxu0 %v220
    %v242 = vpop.f32.mrf.mxu0
    %v243 = vadd.f32 %v213, %v242
    %244 = vdwg.mxu0
    %v245 = vadd.f32 %v240, %v160
    %v246 = vadd.f32 %v243, %v161
    %v247 = vtanh.pop %v245
    %v248 = vtanh.pop %v246
    %v251 = vrot.slane %v247, 7
    %v252 = vrot.slane %v248, 7
    %v253 = vsel %vm82, %v251, %v252
    %v256 = vsel %vm82, 0.0, %v251
    %v257 = vmul.f32 %v256, %v72
    %v258 = vmul.f32 %v253, %v73
    %v259 = vrot.slane %v247, 1
    %v260 = vrot.slane %v248, 1
    %v261 = vsel %vm91, %v259, %v260
    %v264 = vsel %vm91, %v260, 0.0
    %v265 = vmul.f32 %v261, %v78
    %v266 = vmul.f32 %v264, %v79
    %267 = vrot.lane.b32.xlu0 %v247, 32
    %v268 = vpop.permute.xlu0 %267
    %269 = vrot.lane.b32.xlu0 %v248, 32
    %v270 = vpop.permute.xlu0 %269
    %275 = vrot.lane.b32.xlu0 %v265, 64
    %v276 = vpop.permute.xlu0 %275
    %277 = vrot.lane.b32.xlu0 %v266, 64
    %v278 = vpop.permute.xlu0 %277
    %v281 = vsel %vm117, %v257, %v268
    %v282 = vsel %vm117, %v258, %v270
    %v283 = vsel %vm196, %v281, %v276
    %v284 = vsel %vm196, %v282, %v278
    %v285 = vld [vmem:[%s5] sm:$0xff]
    %v286 = vld [vmem:[%s5 + $0x8] sm:$0xff]
    %v287 = vld [vmem:[%s5 + $0x10] sm:$0xff]
    %v288 = vld [vmem:[%s5 + $0x18] sm:$0xff]
    %v289 = vld [vmem:[%s5 + $0x20] sm:$0xff]
    %v290 = vld [vmem:[%s5 + $0x28] sm:$0xff]
    %v291 = vld [vmem:[%s5 + $0x30] sm:$0xff]
    %v292 = vld [vmem:[%s5 + $0x38] sm:$0xff]
    %v293 = vld [vmem:[%s5 + $0x40] sm:$0xff]
    %v294 = vld [vmem:[%s5 + $0x48] sm:$0xff]
    %v295 = vld [vmem:[%s5 + $0x50] sm:$0xff]
    %v296 = vld [vmem:[%s5 + $0x58] sm:$0xff]
    %v297 = vld [vmem:[%s6] sm:$0x1]
    %v299 = vperm.slane %v297, 0
    %v302 = vsel %vm215, %v283, 0
    %v305 = vsel %vm215, %v284, 0
    %307 = vmatpush.msra.mxu0 0.0
    %308 = vmatpush.msra.mxu0 0.0
    %309 = vmatpush.msra.mxu0 0.0
    %310 = vmatpush.msra.mxu0 0.0
    %311 = vmatpush.msra.mxu0 %v296
    %312 = vmatpush.msra.mxu0 %v295
    %313 = vmatpush.msra.mxu0 %v294
    %314 = vmatpush.msra.mxu0 %v293
    %315 = vmatpush.msra.mxu0 %v292
    %316 = vmatpush.msra.mxu0 %v291
    %317 = vmatpush.msra.mxu0 %v290
    %318 = vmatpush.msra.mxu0 %v289
    %319 = vmatpush.msra.mxu0 %v288
    %320 = vmatpush.msra.mxu0 %v287
    %321 = vmatpush.msra.mxu0 %v286
    %322 = vmatpush.msra.mxu0 %v285
    %323 = vmatmul.f32.gmra.mxu0 %v302
    %v324 = vpop.f32.mrf.mxu0
    %v325 = vadd.f32 %v299, %v324
    %326 = vmatmul.f32.gmra.mxu0 %v305
    %v327 = vpop.f32.mrf.mxu0
    %v328 = vadd.f32 %v299, %v327
    %329 = vdwg.mxu0
    %v330 = vadd.f32 %v325, %v247
    %v331 = vadd.f32 %v328, %v248
    %v332 = vtanh.pop %v330
    %v333 = vtanh.pop %v331
    %v336 = vrot.slane %v332, 7
    %v337 = vrot.slane %v333, 7
    %v338 = vsel %vm82, %v336, %v337
    %v341 = vsel %vm82, 0.0, %v336
    %v342 = vmul.f32 %v341, %v72
    %v343 = vmul.f32 %v338, %v73
    %v344 = vrot.slane %v332, 1
    %v345 = vrot.slane %v333, 1
    %v346 = vsel %vm91, %v344, %v345
    %v349 = vsel %vm91, %v345, 0.0
    %v350 = vmul.f32 %v346, %v78
    %v351 = vmul.f32 %v349, %v79
    %352 = vrot.lane.b32.xlu0 %v332, 32
    %v353 = vpop.permute.xlu0 %352
    %354 = vrot.lane.b32.xlu0 %v333, 32
    %v355 = vpop.permute.xlu0 %354
    %360 = vrot.lane.b32.xlu0 %v350, 64
    %v361 = vpop.permute.xlu0 %360
    %362 = vrot.lane.b32.xlu0 %v351, 64
    %v363 = vpop.permute.xlu0 %362
    %v366 = vsel %vm117, %v342, %v353
    %v367 = vsel %vm117, %v343, %v355
    %v368 = vsel %vm196, %v366, %v361
    %v369 = vsel %vm196, %v367, %v363
    %v370 = vld [vmem:[%s7] sm:$0xff]
    %v371 = vld [vmem:[%s7 + $0x8] sm:$0xff]
    %v372 = vld [vmem:[%s7 + $0x10] sm:$0xff]
    %v373 = vld [vmem:[%s7 + $0x18] sm:$0xff]
    %v374 = vld [vmem:[%s7 + $0x20] sm:$0xff]
    %v375 = vld [vmem:[%s7 + $0x28] sm:$0xff]
    %v376 = vld [vmem:[%s7 + $0x30] sm:$0xff]
    %v377 = vld [vmem:[%s7 + $0x38] sm:$0xff]
    %v378 = vld [vmem:[%s7 + $0x40] sm:$0xff]
    %v379 = vld [vmem:[%s7 + $0x48] sm:$0xff]
    %v380 = vld [vmem:[%s7 + $0x50] sm:$0xff]
    %v381 = vld [vmem:[%s7 + $0x58] sm:$0xff]
    %v382 = vld [vmem:[%s8] sm:$0x1]
    %v384 = vperm.slane %v382, 0
    %v387 = vsel %vm215, %v368, 0
    %v390 = vsel %vm215, %v369, 0
    %392 = vmatpush.msra.mxu0 0.0
    %393 = vmatpush.msra.mxu0 0.0
    %394 = vmatpush.msra.mxu0 0.0
    %395 = vmatpush.msra.mxu0 0.0
    %396 = vmatpush.msra.mxu0 %v381
    %397 = vmatpush.msra.mxu0 %v380
    %398 = vmatpush.msra.mxu0 %v379
    %399 = vmatpush.msra.mxu0 %v378
    %400 = vmatpush.msra.mxu0 %v377
    %401 = vmatpush.msra.mxu0 %v376
    %402 = vmatpush.msra.mxu0 %v375
    %403 = vmatpush.msra.mxu0 %v374
    %404 = vmatpush.msra.mxu0 %v373
    %405 = vmatpush.msra.mxu0 %v372
    %406 = vmatpush.msra.mxu0 %v371
    %407 = vmatpush.msra.mxu0 %v370
    %408 = vmatmul.f32.gmra.mxu0 %v387
    %v409 = vpop.f32.mrf.mxu0
    %v410 = vadd.f32 %v384, %v409
    %411 = vmatmul.f32.gmra.mxu0 %v390
    %v412 = vpop.f32.mrf.mxu0
    %v413 = vadd.f32 %v384, %v412
    %414 = vdwg.mxu0
    %v415 = vadd.f32 %v410, %v332
    %v416 = vadd.f32 %v413, %v333
    %v417 = vtanh.pop %v415
    %v418 = vtanh.pop %v416
    %v421 = vrot.slane %v417, 7
    %v422 = vrot.slane %v418, 7
    %v423 = vsel %vm82, %v421, %v422
    %v426 = vsel %vm82, 0.0, %v421
    %v427 = vmul.f32 %v426, %v72
    %v428 = vmul.f32 %v423, %v73
    %v429 = vrot.slane %v417, 1
    %v430 = vrot.slane %v418, 1
    %v431 = vsel %vm91, %v429, %v430
    %v434 = vsel %vm91, %v430, 0.0
    %v435 = vmul.f32 %v431, %v78
    %v436 = vmul.f32 %v434, %v79
    %437 = vrot.lane.b32.xlu0 %v417, 32
    %v438 = vpop.permute.xlu0 %437
    %439 = vrot.lane.b32.xlu0 %v418, 32
    %v440 = vpop.permute.xlu0 %439
    %445 = vrot.lane.b32.xlu0 %v435, 64
    %v446 = vpop.permute.xlu0 %445
    %447 = vrot.lane.b32.xlu0 %v436, 64
    %v448 = vpop.permute.xlu0 %447
    %v451 = vsel %vm117, %v427, %v438
    %v452 = vsel %vm117, %v428, %v440
    %v453 = vsel %vm196, %v451, %v446
    %v454 = vsel %vm196, %v452, %v448
    %v455 = vld [vmem:[%s9] sm:$0xff]
    %v456 = vld [vmem:[%s9 + $0x8] sm:$0xff]
    %v457 = vld [vmem:[%s9 + $0x10] sm:$0xff]
    %v458 = vld [vmem:[%s9 + $0x18] sm:$0xff]
    %v459 = vld [vmem:[%s9 + $0x20] sm:$0xff]
    %v460 = vld [vmem:[%s9 + $0x28] sm:$0xff]
    %v461 = vld [vmem:[%s9 + $0x30] sm:$0xff]
    %v462 = vld [vmem:[%s9 + $0x38] sm:$0xff]
    %v463 = vld [vmem:[%s9 + $0x40] sm:$0xff]
    %v464 = vld [vmem:[%s9 + $0x48] sm:$0xff]
    %v465 = vld [vmem:[%s9 + $0x50] sm:$0xff]
    %v466 = vld [vmem:[%s9 + $0x58] sm:$0xff]
    %v467 = vld [vmem:[%s10] sm:$0x1]
    %v469 = vperm.slane %v467, 0
    %v472 = vsel %vm215, %v453, 0
    %v475 = vsel %vm215, %v454, 0
    %477 = vmatpush.msra.mxu0 0.0
    %478 = vmatpush.msra.mxu0 0.0
    %479 = vmatpush.msra.mxu0 0.0
    %480 = vmatpush.msra.mxu0 0.0
    %481 = vmatpush.msra.mxu0 %v466
    %482 = vmatpush.msra.mxu0 %v465
    %483 = vmatpush.msra.mxu0 %v464
    %484 = vmatpush.msra.mxu0 %v463
    %485 = vmatpush.msra.mxu0 %v462
    %486 = vmatpush.msra.mxu0 %v461
    %487 = vmatpush.msra.mxu0 %v460
    %488 = vmatpush.msra.mxu0 %v459
    %489 = vmatpush.msra.mxu0 %v458
    %490 = vmatpush.msra.mxu0 %v457
    %491 = vmatpush.msra.mxu0 %v456
    %492 = vmatpush.msra.mxu0 %v455
    %493 = vmatmul.f32.gmra.mxu0 %v472
    %v494 = vpop.f32.mrf.mxu0
    %v495 = vadd.f32 %v469, %v494
    %496 = vmatmul.f32.gmra.mxu0 %v475
    %v497 = vpop.f32.mrf.mxu0
    %v498 = vadd.f32 %v469, %v497
    %499 = vdwg.mxu0
    %v500 = vadd.f32 %v495, %v417
    %v501 = vadd.f32 %v498, %v418
    %v502 = vtanh.pop %v500
    %v503 = vtanh.pop %v501
    %504 = vst.msk [vmem:[#allocation2] sm:$0xff] %vm117, %v502
    %505 = vst.msk [vmem:[#allocation2 + $0x8] sm:$0xff] %vm117, %v503
    // Predicated region
    $region46: #{tpu_custom_call.1} parent=1 // pred_check
      _
    $region47: #{tpu_custom_call.1} parent=1 // pred_check_branch
      %507 = sbr.rel (0) target = $region49
    $region48: #{tpu_custom_call.1} parent=1 // pred_region
      %509 = vsyncadd [#allocation3], 0
      %s510 = sshll.u32 [#allocation2], 4
      %s511 = int_to_ptr.vmem [resolvable:$true] %s510
      %s512 = sshll.u32 %s11, 4
      %s513 = int_to_ptr.hbm [resolvable:$true] %s512
      %518 = dma.vmem_to_hbm [thread:$0]  %s511, 256, %s513, [#allocation3], 128, 128, 8
    $region49: #{tpu_custom_call.1} parent=1 // pred_fallthru
      _
    // Predicated region
    $region50: #{tpu_custom_call.1} parent=1 // pred_check
      _
    $region51: #{tpu_custom_call.1} parent=1 // pred_check_branch
      %520 = sbr.rel (0) target = $region53
    $region52: #{tpu_custom_call.1} parent=1 // pred_region
      %522 = dma.done [#allocation3], 256
    $region53: #{tpu_custom_call.1} parent=1 // pred_fallthru
      _
    %523 = vsyncpa [#allocation3], 1

</llo_original>
